<compile_context>
chip_gen: v7x
topology: tpu7x:2x2x1
jax: 0.10.0
libtpu: 0.0.40
codegen_flags: <defaults>
</compile_context>

<pallas_src>
import functools

import jax
import jax.numpy as jnp
from jax.experimental import pallas as pl
from jax.experimental.pallas import tpu as pltpu

_RMSE_EPS = 1e-8  # RMSELoss = sqrt(MSE + eps)


def _round_up(x, m):
    return ((x + m - 1) // m) * m


def _pick_lane_tile(hw, cap):
    """Largest multiple of 128 that divides hw and is <= cap, else hw itself."""
    best = None
    t = 128
    while t <= min(hw, cap):
        if hw % t == 0:
            best = t
        t += 128
    return best if best is not None else hw


def _pick_row_tile(n, cap=64):
    t = min(n, cap)
    while t > 1 and n % t:
        t -= 1
    return max(t, 1)


def _classifier_kernel(x_ref, p_ref, o_ref, acc_ref, *,
                       C, D, off_b1, off_w2, off_b2, inv_hw):
    # x_ref : (N_TILE, C, LANE_TILE)   streamed spatial chunk
    # p_ref : (SLAB_ROWS, D)           packed head params (w1|b1|w2|b2)
    # o_ref : (N_TILE, D)              lane-dense padded logits
    # acc_ref: (N_TILE, C)             running pool-sum (VMEM scratch)
    k = pl.program_id(1)

    @pl.when(k == 0)
    def _init():
        acc_ref[...] = jnp.zeros_like(acc_ref)

    # Streaming partial sum over the spatial (lane) axis — XLU reduce, cheap
    # relative to the HBM-bound DMA stream.
    acc_ref[...] += jnp.sum(x_ref[...], axis=-1)

    @pl.when(k == pl.num_programs(1) - 1)
    def _finalize():
        pooled = acc_ref[...] * inv_hw                     # (N_TILE, C) f32

        w1 = p_ref[0:C, :]                                 # (C, D)
        b1 = p_ref[off_b1:off_b1 + 1, :]                   # (1, D)
        w2 = p_ref[off_w2:off_w2 + D, :]                   # (D, D)
        b2 = p_ref[off_b2:off_b2 + 1, :]                   # (1, D)

        if C <= 16:
            # Tiny fc1: unrolled VPU broadcast-multiply-accumulate; a K=C
            # MXU matmul would be almost entirely padding (v5e/v6e MRF drain).
            h = jnp.zeros((pooled.shape[0], w1.shape[1]), jnp.float32)
            for c in range(C):
                h = h + pooled[:, c:c + 1] * w1[c:c + 1, :]
        else:
            # Large channel count: proper MXU matmul, bf16 operands, f32 acc.
            h = jnp.dot(pooled.astype(jnp.bfloat16), w1.astype(jnp.bfloat16),
                        preferred_element_type=jnp.float32)
        h = jnp.maximum(h + b1, 0.0)                       # (N_TILE, D), ReLU

        # fc2: K = N = D (>=128) after padding — MXU-friendly, bf16 operands.
        logits = jnp.dot(h.astype(jnp.bfloat16), w2.astype(jnp.bfloat16),
                         preferred_element_type=jnp.float32) + b2
        o_ref[...] = logits                                # unmasked lane-dense store


def classifier_forward(image_nchw, targets, params, *, max_lane_tile=1024):
    """Pallas implementation of Classifier.forward.

    image_nchw : (N, C, H, W) float32
    targets    : (N, OUT)     float32
    params     : (w1 (C,HID), b1 (1,HID), w2 (HID,OUT), b2 (1,OUT))
    Returns (loss, metrics, outputs).
    """
    N, C, H, W = image_nchw.shape
    HW = H * W
    w1, b1, w2, b2 = params
    HID = w1.shape[1]
    OUT = w2.shape[1]

    # Lane-dense padded head width (>=128) shared by fc1 output / fc2 / logits.
    D = max(_round_up(HID, 128), _round_up(OUT, 128))

    x3d = image_nchw.reshape(N, C, HW).astype(jnp.float32)

    # ---- pack head params into one slab (one DMA, sublane-aligned sections) ----
    off_b1 = _round_up(C, 8)
    off_w2 = off_b1 + 8
    off_b2 = off_w2 + D
    slab_rows = off_b2 + 8
    slab = jnp.zeros((slab_rows, D), jnp.float32)
    slab = slab.at[0:C, 0:HID].set(w1.astype(jnp.float32))
    slab = slab.at[off_b1, 0:HID].set(b1.reshape(-1).astype(jnp.float32))
    slab = slab.at[off_w2:off_w2 + HID, 0:OUT].set(w2.astype(jnp.float32))
    slab = slab.at[off_b2, 0:OUT].set(b2.reshape(-1).astype(jnp.float32))

    # ---- tiling ----
    lane_tile = _pick_lane_tile(HW, max_lane_tile)   # multiple of 128 (or full HW)
    n_spatial = HW // lane_tile
    n_tile = _pick_row_tile(N)
    n_row_tiles = N // n_tile
    grid = (n_row_tiles, n_spatial)

    kernel = functools.partial(
        _classifier_kernel,
        C=C, D=D, off_b1=off_b1, off_w2=off_w2, off_b2=off_b2,
        inv_hw=1.0 / float(HW))

    # Explicit VMEM budget (double-buffered inputs); stays far below v7x's
    # 64 MiB physical VMEM.
    x_blk_bytes = n_tile * C * lane_tile * 4
    vmem_limit = 2 * x_blk_bytes + 2 * slab_rows * D * 4 + 2 * n_tile * D * 4
    vmem_limit = int(min(max(vmem_limit + (2 << 20), 4 << 20), 48 << 20))

    logits_pad = pl.pallas_call(
        kernel,
        out_shape=jax.ShapeDtypeStruct((N, D), jnp.float32),
        grid_spec=pltpu.PrefetchScalarGridSpec(
            num_scalar_prefetch=0,
            grid=grid,
            in_specs=[
                pl.BlockSpec((n_tile, C, lane_tile), lambda i, k: (i, 0, k)),
                pl.BlockSpec((slab_rows, D), lambda i, k: (0, 0)),
            ],
            out_specs=pl.BlockSpec((n_tile, D), lambda i, k: (i, 0)),
            scratch_shapes=[pltpu.VMEM((n_tile, C), jnp.float32)],
        ),
        compiler_params=pltpu.CompilerParams(
            dimension_semantics=("parallel", "arbitrary"),
            vmem_limit_bytes=vmem_limit,
        ),
    )(x3d, slab)

    outputs = logits_pad[:, :OUT]                       # (N, OUT) real logits

    # Scalar RMSE loss in the wrapper (cheaper than a padded (1,1) VMEM output
    # + in-kernel cross-lane reduce in the epilogue).
    diff = outputs - targets.astype(jnp.float32)
    loss = jnp.sqrt(jnp.mean(diff * diff) + _RMSE_EPS)

    # TODO(synk): the original forward references an undefined `loss_dffclt`;
    # report the RMSE loss under that metrics key instead.
    metrics = {'loss_dffclt': loss}
    return loss, metrics, outputs


def init_params(key, c_in, hidden, n_out):
    k1, k2, k3, k4 = jax.random.split(key, 4)
    w1 = jax.random.normal(k1, (c_in, hidden), jnp.float32) * 0.1
    b1 = jax.random.normal(k2, (1, hidden), jnp.float32) * 0.01
    w2 = jax.random.normal(k3, (hidden, n_out), jnp.float32) * 0.1
    b2 = jax.random.normal(k4, (1, n_out), jnp.float32) * 0.01
    return w1, b1, w2, b2


def _reference_forward(image_nchw, targets, params):
    """Pure-JAX reference (f32 throughout) for correctness checking."""
    N, C, H, W = image_nchw.shape
    w1, b1, w2, b2 = params
    pooled = jnp.mean(image_nchw.reshape(N, C, H * W), axis=-1)
    h = jnp.maximum(pooled @ w1 + b1, 0.0)
    logits = h @ w2 + b2
    diff = logits - targets
    loss = jnp.sqrt(jnp.mean(diff * diff) + _RMSE_EPS)
    return loss, logits


if __name__ == "__main__":
    key = jax.random.PRNGKey(0)
    k_img, k_tgt, k_par = jax.random.split(key, 3)

    N, C, H, W = 2, 4, 16, 16      # small NCHW image batch
    HIDDEN, N_OUT = 32, 2          # "two class classification" head

    image = jax.random.normal(k_img, (N, C, H, W), jnp.float32)
    targets = jax.random.normal(k_tgt, (N, N_OUT), jnp.float32)
    params = init_params(k_par, C, HIDDEN, N_OUT)

    # max_lane_tile=128 -> H*W=256 streams in 2 spatial grid steps, exercising
    # the pipelined reduction path.
    loss, metrics, outputs = classifier_forward(image, targets, params,
                                                max_lane_tile=128)
    jax.block_until_ready((loss, outputs))

    # sanity: shapes / finiteness / numerics vs pure-JAX reference
    assert outputs.shape == (N, N_OUT)
    assert bool(jnp.isfinite(loss))
    ref_loss, ref_out = _reference_forward(image, targets, params)
    assert bool(jnp.allclose(outputs, ref_out, rtol=5e-2, atol=5e-2)), \
        "logits mismatch vs reference"
    assert bool(jnp.allclose(loss, ref_loss, rtol=5e-2, atol=5e-2)), \
        "loss mismatch vs reference"
    print("KERNEL_OK")
</pallas_src>

<mosaic_0001>
module attributes {stable_mosaic.version = 11 : i64} {
  func.func @_classifier_kernel(%arg0: i32, %arg1: i32, %arg2: memref<2x4x128xf32, #tpu.memory_space<vmem>>, %arg3: memref<152x128xf32, #tpu.memory_space<vmem>>, %arg4: memref<2x128xf32, #tpu.memory_space<vmem>>, %arg5: memref<2x4xf32, #tpu.memory_space<vmem>>) attributes {dimension_semantics = [#tpu.dimension_semantics<parallel>, #tpu.dimension_semantics<arbitrary>], iteration_bounds = array<i64: 1, 2>, scalar_prefetch = 0 : i64, scratch_operands = 1 : i64, tpu.core_type = #tpu.core_type<tc>, window_params = [{transform_indices = @transform_0, window_bounds = array<i64: 2, 4, 128>}, {pipeline_mode = #tpu.pipeline_mode<synchronous>, transform_indices = @transform_1, window_bounds = array<i64: 152, 128>}, {transform_indices = @transform_2, window_bounds = array<i64: 2, 128>}]} {
    %c0_i32 = arith.constant 0 : i32
    %0 = arith.cmpi eq, %arg1, %c0_i32 : i32
    %1 = arith.extui %0 : i1 to i32
    %c0_i32_0 = arith.constant 0 : i32
    %2 = arith.cmpi ne, %1, %c0_i32_0 : i32
    scf.if %2 {
      %cst_8 = arith.constant 0.000000e+00 : f32
      %11 = vector.broadcast %cst_8 : f32 to vector<2x4xf32>
      %c0_9 = arith.constant 0 : index
      %c0_10 = arith.constant 0 : index
      %12 = vector.load %arg5[%c0_9, %c0_10] : memref<2x4xf32, #tpu.memory_space<vmem>>, vector<2x4xf32>
      tpu.vector_store %arg5[%c0_9, %c0_10], %11 {strides = array<i32>} : memref<2x4xf32, #tpu.memory_space<vmem>>, vector<2x4xf32>,
    } else {
    }
    %c0 = arith.constant 0 : index
    %c0_1 = arith.constant 0 : index
    %3 = vector.load %arg5[%c0, %c0_1] : memref<2x4xf32, #tpu.memory_space<vmem>>, vector<2x4xf32>
    %c0_2 = arith.constant 0 : index
    %c0_3 = arith.constant 0 : index
    %c0_4 = arith.constant 0 : index
    %4 = vector.load %arg2[%c0_2, %c0_3, %c0_4] : memref<2x4x128xf32, #tpu.memory_space<vmem>>, vector<2x4x128xf32>
    %cst = arith.constant dense<0.000000e+00> : vector<2x4xf32>
    %5 = vector.multi_reduction <add>, %4, %cst [2] : vector<2x4x128xf32> to vector<2x4xf32>
    %6 = arith.addf %3, %5 : vector<2x4xf32>
    %c0_5 = arith.constant 0 : index
    %c0_6 = arith.constant 0 : index
    %7 = vector.load %arg5[%c0_5, %c0_6] : memref<2x4xf32, #tpu.memory_space<vmem>>, vector<2x4xf32>
    tpu.vector_store %arg5[%c0_5, %c0_6], %6 {strides = array<i32>} : memref<2x4xf32, #tpu.memory_space<vmem>>, vector<2x4xf32>,
    %c1_i32 = arith.constant 1 : i32
    %8 = arith.cmpi eq, %arg1, %c1_i32 : i32
    %9 = arith.extui %8 : i1 to i32
    %c0_i32_7 = arith.constant 0 : i32
    %10 = arith.cmpi ne, %9, %c0_i32_7 : i32
    scf.if %10 {
      %c0_8 = arith.constant 0 : index
      %c0_9 = arith.constant 0 : index
      %11 = vector.load %arg5[%c0_8, %c0_9] : memref<2x4xf32, #tpu.memory_space<vmem>>, vector<2x4xf32>
      %cst_10 = arith.constant 3.906250e-03 : f32
      %12 = vector.broadcast %cst_10 : f32 to vector<2x4xf32>
      %13 = arith.mulf %11, %12 : vector<2x4xf32>
      %c0_11 = arith.constant 0 : index
      %c0_12 = arith.constant 0 : index
      %14 = vector.load %arg3[%c0_11, %c0_12] : memref<152x128xf32, #tpu.memory_space<vmem>>, vector<4x128xf32>
      %c8 = arith.constant 8 : index
      %c0_13 = arith.constant 0 : index
      %15 = vector.load %arg3[%c8, %c0_13] : memref<152x128xf32, #tpu.memory_space<vmem>>, vector<1x128xf32>
      %c16 = arith.constant 16 : index
      %c0_14 = arith.constant 0 : index
      %16 = vector.load %arg3[%c16, %c0_14] : memref<152x128xf32, #tpu.memory_space<vmem>>, vector<128x128xf32>
      %c144 = arith.constant 144 : index
      %c0_15 = arith.constant 0 : index
      %17 = vector.load %arg3[%c144, %c0_15] : memref<152x128xf32, #tpu.memory_space<vmem>>, vector<1x128xf32>
      %cst_16 = arith.constant 0.000000e+00 : f32
      %18 = vector.broadcast %cst_16 : f32 to vector<2x128xf32>
      %19 = vector.extract_strided_slice %13 {offsets = [0, 0], sizes = [2, 1], strides = [1, 1]} : vector<2x4xf32> to vector<2x1xf32>
      %20 = vector.extract_strided_slice %14 {offsets = [0, 0], sizes = [1, 128], strides = [1, 1]} : vector<4x128xf32> to vector<1x128xf32>
      %21 = vector.broadcast %19 : vector<2x1xf32> to vector<2x128xf32>
      %22 = vector.broadcast %20 : vector<1x128xf32> to vector<2x128xf32>
      %23 = arith.mulf %21, %22 : vector<2x128xf32>
      %24 = arith.addf %18, %23 : vector<2x128xf32>
      %25 = vector.extract_strided_slice %13 {offsets = [0, 1], sizes = [2, 1], strides = [1, 1]} : vector<2x4xf32> to vector<2x1xf32>
      %26 = vector.extract_strided_slice %14 {offsets = [1, 0], sizes = [1, 128], strides = [1, 1]} : vector<4x128xf32> to vector<1x128xf32>
      %27 = vector.broadcast %25 : vector<2x1xf32> to vector<2x128xf32>
      %28 = vector.broadcast %26 : vector<1x128xf32> to vector<2x128xf32>
      %29 = arith.mulf %27, %28 : vector<2x128xf32>
      %30 = arith.addf %24, %29 : vector<2x128xf32>
      %31 = vector.extract_strided_slice %13 {offsets = [0, 2], sizes = [2, 1], strides = [1, 1]} : vector<2x4xf32> to vector<2x1xf32>
      %32 = vector.extract_strided_slice %14 {offsets = [2, 0], sizes = [1, 128], strides = [1, 1]} : vector<4x128xf32> to vector<1x128xf32>
      %33 = vector.broadcast %31 : vector<2x1xf32> to vector<2x128xf32>
      %34 = vector.broadcast %32 : vector<1x128xf32> to vector<2x128xf32>
      %35 = arith.mulf %33, %34 : vector<2x128xf32>
      %36 = arith.addf %30, %35 : vector<2x128xf32>
      %37 = vector.extract_strided_slice %13 {offsets = [0, 3], sizes = [2, 1], strides = [1, 1]} : vector<2x4xf32> to vector<2x1xf32>
      %38 = vector.extract_strided_slice %14 {offsets = [3, 0], sizes = [1, 128], strides = [1, 1]} : vector<4x128xf32> to vector<1x128xf32>
      %39 = vector.broadcast %37 : vector<2x1xf32> to vector<2x128xf32>
      %40 = vector.broadcast %38 : vector<1x128xf32> to vector<2x128xf32>
      %41 = arith.mulf %39, %40 : vector<2x128xf32>
      %42 = arith.addf %36, %41 : vector<2x128xf32>
      %43 = vector.broadcast %15 : vector<1x128xf32> to vector<2x128xf32>
      %44 = arith.addf %42, %43 : vector<2x128xf32>
      %cst_17 = arith.constant 0.000000e+00 : f32
      %45 = vector.broadcast %cst_17 : f32 to vector<2x128xf32>
      %46 = arith.maximumf %44, %45 : vector<2x128xf32>
      %47 = arith.truncf %46 : vector<2x128xf32> to vector<2x128xbf16>
      %48 = arith.truncf %16 : vector<128x128xf32> to vector<128x128xbf16>
      %cst_18 = arith.constant dense<0.000000e+00> : vector<2x128xf32>
      %49 = tpu.matmul %47, %48, %cst_18 {dimension_numbers = #tpu.dot_dimension_numbers<[1], [0], [0], [1], [0, 0, 1, 1], [], []>} : vector<2x128xbf16>, vector<128x128xbf16>, vector<2x128xf32> -> vector<2x128xf32>
      %50 = vector.broadcast %17 : vector<1x128xf32> to vector<2x128xf32>
      %51 = arith.addf %49, %50 : vector<2x128xf32>
      %c0_19 = arith.constant 0 : index
      %c0_20 = arith.constant 0 : index
      %52 = vector.load %arg4[%c0_19, %c0_20] : memref<2x128xf32, #tpu.memory_space<vmem>>, vector<2x128xf32>
      tpu.vector_store %arg4[%c0_19, %c0_20], %51 {strides = array<i32>} : memref<2x128xf32, #tpu.memory_space<vmem>>, vector<2x128xf32>,
    } else {
    }
    return
  }
  func.func @transform_0(%arg0: i32, %arg1: i32) -> (i32, i32, i32) {
    %c0_i32 = arith.constant 0 : i32
    %c0_i32_0 = arith.constant 0 : i32
    return %arg0, %c0_i32, %arg1 : i32, i32, i32
  }
  func.func @transform_1(%arg0: i32, %arg1: i32) -> (i32, i32) {
    %c0_i32 = arith.constant 0 : i32
    %c0_i32_0 = arith.constant 0 : i32
    %c0_i32_1 = arith.constant 0 : i32
    return %c0_i32, %c0_i32_0 : i32, i32
  }
  func.func @transform_2(%arg0: i32, %arg1: i32) -> (i32, i32) {
    %c0_i32 = arith.constant 0 : i32
    %c0_i32_0 = arith.constant 0 : i32
    return %arg0, %c0_i32 : i32, i32
  }
}

</mosaic_0001>

<llo_original>
// kernel: tpu_custom_call.1
$region0: #{tpu_custom_call.1}
  #allocation0 [shape = 'u32[]', space=smem, size = 0x4, offset = 0x4, fixed_abs, tag = 'smem constant byte address 0x4 - core index']
  #allocation1 [shape = 'u32[144,128]{1,0:T(1,128)}', space=vmem, size = 0x12000, scoped, tag = 'internal scratch']
  #allocation2 [shape = 'f32[2,4]{1,0:T(2,128)}', space=vmem, size = 0x400, scoped, tag = 'scratch operand']
  %s0 = inlined_call_operand.hbm [shape: f32[2,4,256], index: 0, kind: input, shape index: {}]
  %s1 = inlined_call_operand.hbm [shape: f32[152,128], index: 1, kind: input, shape index: {}]
  %s2 = inlined_call_operand.hbm [shape: f32[2,128], index: 2, kind: output, shape index: {}]
  %s3 = sld [smem:[#allocation0]]
  $region57: #{tpu_custom_call.1} parent=0
    _
  %s5 = ssub.s32 1, %s3
  %s6 = scalar_select 0, %s5, %s3
  $region1: #{tpu_custom_call.1} parent=0
    #allocation3 [shape = 'u8[8192]{0}', space=vmem, size = 0x2000, scoped, tag = 'input window, operand 0']
    #allocation4 [shape = 's32[2]{0}', space=sflag, size = 0x8, scoped, tag = 'scoped memory for tpu_custom_call.1']
    #allocation5 [shape = 's32[2]{0}', space=sflag, size = 0x8, scoped, tag = 'scoped memory for tpu_custom_call.1']
    #allocation6 [shape = 'u8[77824]{0}', space=vmem, size = 0x13000, scoped, tag = 'input window, operand 1, single buffered']
    #allocation7 [shape = 's32[1]{0}', space=sflag, size = 0x4, scoped, tag = 'scoped memory for tpu_custom_call.1']
    #allocation8 [shape = 'u8[1024]{0}', space=vmem, size = 0x400, scoped, tag = 'output window, operand 0, single buffered']
    %7 = vsyncpa [#allocation4], 0
    %s8 = scalar_lea.sflag [#allocation4], 1
    %9 = vsyncpa %s8, 0
    %10 = vsyncpa [#allocation7], 0
    %11 = vsyncpa [#allocation5], 0
    loop: start=0, step=1, limit=4
    $region2: #{tpu_custom_call.1} parent=1 // loop_pre_header
      _
    $region3: #{tpu_custom_call.1} parent=1 // loop_header
      %s13 = sphi 0, %s17
      %p14 = scmp.ge.s32.totalorder %s13, 4
      %s20 = sphi 0, %s32
      %s21 = sphi 0, %s28
      %s22 = sphi 0, %s20
      %s23 = sphi 0, %s21
      %s24 = sphi 0, %s22
      %s25 = sphi 0, %s23
      %s37 = sphi 0, %s39
      %s40 = sphi 0, %s37
      %s41 = sphi 0, %s40
      %s57 = sphi 0, %s41
      %s61 = sphi 0, %s61
      %s63 = sphi 0, %s61
      %s64 = sphi 0, %s63
      %s78 = sphi 0, %s64
      %s84 = sphi 0, %s86
      %s87 = sphi 0, %s84
      %s88 = sphi 0, %s87
      %s104 = sphi 0, %s88
    $region4: #{tpu_custom_call.1} parent=1 // loop_header_branch
      %16 = sbr.rel (%p14) target = $region8
    $region5: #{tpu_custom_call.1} parent=1 // loop_body
      %s18 = ssub.s32 %s13, 1
      %s19 = ssub.s32 %s13, 2
      %s26 = sadd.s32 1, %s21
      %p27 = scmp.ge.s32.totalorder %s26, 2
      %s28 = scalar_select %p27, 0, %s26
      %s29 = sadd.s32 1, %s20
      %s30 = scalar_select %p27, %s29, %s20
      %p31 = scmp.ge.s32.totalorder %s30, 1
      %s32 = scalar_select %p31, 0, %s30
      %s33 = ssub.s32 %s20, %s32
      %s34 = ssub.s32 %s21, %s28
      %s35 = sor.u32 %s33, %s34
      %p36 = scmp.eq.s32.totalorder %s35, 0
      %s38 = sadd.s32 %s37, 1
      %s39 = scalar_select %p36, %s37, %s38
      %p42 = pneg %p36
      %p43 = scmp.eq.s32.totalorder %s13, 1
      %p44 = por %p42, %p43
      %p45 = scmp.ne.s32.totalorder %s37, %s40
      %p46 = scmp.eq.s32.totalorder %s13, 0
      %p47 = por %p45, %p46
      %p48 = scmp.ne.s32.totalorder %s37, %s40
      %p49 = scmp.eq.s32.totalorder %s18, 1
      %p50 = por %p48, %p49
      %p51 = scmp.ne.s32.totalorder %s40, %s41
      %p52 = scmp.eq.s32.totalorder %s18, 0
      %p53 = por %p51, %p52
      %p54 = scmp.ne.s32.totalorder %s40, %s41
      %p55 = scmp.eq.s32.totalorder %s19, 1
      %p56 = por %p54, %p55
      %p58 = scmp.ne.s32.totalorder %s41, %s57
      %p59 = scmp.eq.s32.totalorder %s19, 0
      %p60 = por %p58, %p59
      %s62 = sadd.s32 %s61, 1
      %p65 = scmp.eq.s32.totalorder %s13, 1
      %p66 = scmp.ne.s32.totalorder %s61, %s63
      %p67 = scmp.eq.s32.totalorder %s13, 0
      %p68 = por %p66, %p67
      %p69 = scmp.ne.s32.totalorder %s61, %s63
      %p70 = scmp.eq.s32.totalorder %s18, 1
      %p71 = por %p69, %p70
      %p72 = scmp.ne.s32.totalorder %s63, %s64
      %p73 = scmp.eq.s32.totalorder %s18, 0
      %p74 = por %p72, %p73
      %p75 = scmp.ne.s32.totalorder %s63, %s64
      %p76 = scmp.eq.s32.totalorder %s19, 1
      %p77 = por %p75, %p76
      %p79 = scmp.ne.s32.totalorder %s64, %s78
      %p80 = scmp.eq.s32.totalorder %s19, 0
      %p81 = por %p79, %p80
      %s82 = ssub.s32 %s20, %s32
      %p83 = scmp.eq.s32.totalorder %s82, 0
      %s85 = sadd.s32 %s84, 1
      %s86 = scalar_select %p83, %s84, %s85
      %p89 = pneg %p83
      %p90 = scmp.eq.s32.totalorder %s13, 1
      %p91 = por %p89, %p90
      %p92 = scmp.ne.s32.totalorder %s84, %s87
      %p93 = scmp.eq.s32.totalorder %s13, 0
      %p94 = por %p92, %p93
      %p95 = scmp.ne.s32.totalorder %s84, %s87
      %p96 = scmp.eq.s32.totalorder %s18, 1
      %p97 = por %p95, %p96
      %p98 = scmp.ne.s32.totalorder %s87, %s88
      %p99 = scmp.eq.s32.totalorder %s18, 0
      %p100 = por %p98, %p99
      %p101 = scmp.ne.s32.totalorder %s87, %s88
      %p102 = scmp.eq.s32.totalorder %s19, 1
      %p103 = por %p101, %p102
      %p105 = scmp.ne.s32.totalorder %s88, %s104
      %p106 = scmp.eq.s32.totalorder %s19, 0
      %p107 = por %p105, %p106
      %p108 = scmp.le.s32.totalorder 1, %s13
      %p109 = scmp.lt.s32.totalorder %s13, 3
      %p110 = pnand %p108, %p109
      %p111 = pneg %p110
      // Predicated region
      $region9: #{tpu_custom_call.1} parent=5 // pred_check
        _
      $region10: #{tpu_custom_call.1} parent=5 // pred_check_branch
        %113 = sbr.rel (%p110) target = $region12
      $region11: #{tpu_custom_call.1} parent=5 // pred_region
        %s114 = ssub.s32 %s13, 1
        // Predicated region
        $region13: #{tpu_custom_call.1} parent=11 // pred_check
          %p115 = pneg %p74
        $region14: #{tpu_custom_call.1} parent=11 // pred_check_branch
          %117 = sbr.rel (%p115) target = $region16
        $region15: #{tpu_custom_call.1} parent=11 // pred_region
          %s119 = ssub.s32 2432, 2432
          %120 = vsyncadd [#allocation7], %s119
          %s121 = sshll.u32 [#allocation6], 4
          %s122 = int_to_ptr.vmem [resolvable:$true] %s121
          %127 = dma.hbm_to_vmem [thread:$0]  %s1, 2432, %s122, [#allocation7], 128, 128, 8
        $region16: #{tpu_custom_call.1} parent=11 // pred_fallthru
          _
      $region12: #{tpu_custom_call.1} parent=5 // pred_fallthru
        _
      %p128 = scmp.lt.s32.totalorder %s13, 2
      // Predicated region
      $region17: #{tpu_custom_call.1} parent=5 // pred_check
        %p129 = pneg %p128
      $region18: #{tpu_custom_call.1} parent=5 // pred_check_branch
        %131 = sbr.rel (%p129) target = $region20
      $region19: #{tpu_custom_call.1} parent=5 // pred_region
        // Predicated region
        $region21: #{tpu_custom_call.1} parent=19 // pred_check
          %p132 = pneg %p47
        $region22: #{tpu_custom_call.1} parent=19 // pred_check_branch
          %134 = sbr.rel (%p132) target = $region24
        $region23: #{tpu_custom_call.1} parent=19 // pred_region
          %s135 = sand.u32 %s37, 1
          %s136 = scalar_lea.sflag [#allocation4], %s135
          %s137 = sand.u32 %s37, 1
          %s138 = smul.addr %s137, 8
          %s139 = scalar_lea.vmem [#allocation3], %s138
          %s140 = smul.u32 2, %s20
          %s142 = ssub.s32 128, 128
          %143 = vsyncadd %s136, %s142
          %s144 = smul.addr %s140, 2
          %s145 = sadd.s32 %s21, %s144
          %s146 = smul.addr %s145, 64
          %s147 = scalar_lea.hbm %s0, %s146
          %s148 = sshll.u32 %s139, 4
          %s149 = int_to_ptr.vmem [resolvable:$true] %s148
          %154 = dma.hbm_to_vmem [thread:$0]  %s147, 128, %s149, %s136, 128, 64, 4
        $region24: #{tpu_custom_call.1} parent=19 // pred_fallthru
          _
      $region20: #{tpu_custom_call.1} parent=5 // pred_fallthru
        _
      %p155 = scmp.le.s32.totalorder 1, %s13
      %p156 = scmp.lt.s32.totalorder %s13, 3
      %p157 = pnand %p155, %p156
      %p158 = pneg %p157
      // Predicated region
      $region25: #{tpu_custom_call.1} parent=5 // pred_check
        _
      $region26: #{tpu_custom_call.1} parent=5 // pred_check_branch
        %160 = sbr.rel (%p157) target = $region28
      $region27: #{tpu_custom_call.1} parent=5 // pred_region
        %s161 = ssub.s32 %s13, 1
        %s162 = sand.u32 %s40, 1
        %s163 = scalar_lea.sflag [#allocation4], %s162
        %s164 = sand.u32 %s40, 1
        %s165 = smul.addr %s164, 8
        %s166 = scalar_lea.vmem [#allocation3], %s165
        // Predicated region
        $region29: #{tpu_custom_call.1} parent=27 // pred_check
          %p167 = pneg %p53
        $region30: #{tpu_custom_call.1} parent=27 // pred_check_branch
          %169 = sbr.rel (%p167) target = $region32
        $region31: #{tpu_custom_call.1} parent=27 // pred_region
          %170 = dma.done %s163, 128
        $region32: #{tpu_custom_call.1} parent=27 // pred_fallthru
          _
        // Predicated region
        $region33: #{tpu_custom_call.1} parent=27 // pred_check
          %p171 = pneg %p74
        $region34: #{tpu_custom_call.1} parent=27 // pred_check_branch
          %173 = sbr.rel (%p171) target = $region36
        $region35: #{tpu_custom_call.1} parent=27 // pred_region
          %174 = dma.done [#allocation7], 2432
        $region36: #{tpu_custom_call.1} parent=27 // pred_fallthru
          _
        %s175 = sand.u32 %s40, 1
        %s176 = scalar_lea.sflag [#allocation4], %s175
        %s177 = sand.u32 %s40, 1
        %s178 = smul.addr %s177, 8
        %s179 = scalar_lea.vmem [#allocation3], %s178
        %p180 = pneg %p53
        %p181 = pneg %p50
        %p182 = pneg %p74
        %p183 = pneg %p71
        %p184 = pneg %p100
        %p185 = pneg %p97
        %s186 = smul.u32 2, %s22
        %p188 = scmp.eq.s32.totalorder %s23, 0
        // Predicated region
        $region37: #{tpu_custom_call.1} parent=27 // pred_check
          %p189 = pneg %p188
        $region38: #{tpu_custom_call.1} parent=27 // pred_check_branch
          %191 = sbr.rel (%p189) target = $region40
        $region39: #{tpu_custom_call.1} parent=27 // pred_region
          %vm192 = vcmask 25600
          %193 = vst.msk [vmem:[#allocation2] sm:$0x3] %vm192, 0.0
        $region40: #{tpu_custom_call.1} parent=27 // pred_fallthru
          _
        %v194 = vld [vmem:[#allocation2] sm:$0x3]
        %v195 = vld [vmem:[%s166] sm:$0xf]
        %v196 = vld [vmem:[%s166 + $0x4] sm:$0xf]
        %vm197 = vcmask 1043456
        %v198 = vsel %vm197, %v195, 0.0
        %199 = vadd.xlane.f32.xlu0 %v198
        %v200 = vpop.xlane.xlu0 %199
        %v201 = vsel %vm197, %v196, 0.0
        %202 = vadd.xlane.f32.xlu0 %v201
        %v203 = vpop.xlane.xlu0 %202
        %v206 = vlaneseq
        %v207 = vand.u32 %v206, 127
        %v208 = vlaneseq
        %v209 = vshrl.u32 %v208, 7
        %v210 = vsub.s32 %v207, %v209
        %v211 = vrot.slane %v200, %v210
        %v212 = vlaneseq
        %v213 = vshrl.u32 %v212, 7
        %v214 = vsub.s32 %v207, %v213
        %v215 = vrot.slane %v203, %v214
        %vm216 = vcmask 1041409
        %v217 = vsel %vm216, %v215, %v211
        %v219 = vadd.f32 %v194, %v217
        %vm220 = vcmask 25600
        %221 = vst.msk [vmem:[#allocation2] sm:$0x3] %vm220, %v219
        %p222 = scmp.eq.s32.totalorder %s23, 1
        // Predicated region
        $region41: #{tpu_custom_call.1} parent=27 // pred_check
          %p223 = pneg %p222
        $region42: #{tpu_custom_call.1} parent=27 // pred_check_branch
          %225 = sbr.rel (%p223) target = $region44
        $region43: #{tpu_custom_call.1} parent=27 // pred_region
          %v226 = vld [vmem:[#allocation2] sm:$0x3]
          %v227 = vmul.f32 %v226, 0.00390625
          %v228 = vld [vmem:[#allocation6] sm:$0xf]
          %v229 = vld [vmem:[#allocation6 + $0x8] sm:$0x1]
          %v230 = vld [vmem:[#allocation6 + $0x10] sm:$0xff]
          %v231 = vld [vmem:[#allocation6 + $0x18] sm:$0xff]
          %v232 = vld [vmem:[#allocation6 + $0x20] sm:$0xff]
          %v233 = vld [vmem:[#allocation6 + $0x28] sm:$0xff]
          %v234 = vld [vmem:[#allocation6 + $0x30] sm:$0xff]
          %v235 = vld [vmem:[#allocation6 + $0x38] sm:$0xff]
          %v236 = vld [vmem:[#allocation6 + $0x40] sm:$0xff]
          %v237 = vld [vmem:[#allocation6 + $0x48] sm:$0xff]
          %v238 = vld [vmem:[#allocation6 + $0x50] sm:$0xff]
          %v239 = vld [vmem:[#allocation6 + $0x58] sm:$0xff]
          %v240 = vld [vmem:[#allocation6 + $0x60] sm:$0xff]
          %v241 = vld [vmem:[#allocation6 + $0x68] sm:$0xff]
          %v242 = vld [vmem:[#allocation6 + $0x70] sm:$0xff]
          %v243 = vld [vmem:[#allocation6 + $0x78] sm:$0xff]
          %v244 = vld [vmem:[#allocation6 + $0x80] sm:$0xff]
          %v245 = vld [vmem:[#allocation6 + $0x88] sm:$0xff]
          %v246 = vld [vmem:[#allocation6 + $0x90] sm:$0x1]
          %248 = vset.pattern.permute.xlu0 0
          %249 = vperm.xlu0 %248, %v227
          %v250 = vpop.permute.xlu0 %249
          %v252 = vlaneseq
          %v253 = vshrl.u32 %v252, 7
          %v254 = vsub.s32 0, %v253
          %v255 = vrot.slane %v228, %v254
          %v256 = vmul.f32 %v250, %v255
          %v257 = vadd.f32 %v256, 0.0
          %258 = vset.pattern.permute.xlu0 1
          %259 = vperm.xlu0 %258, %v227
          %v260 = vpop.permute.xlu0 %259
          %v262 = vlaneseq
          %v263 = vshrl.u32 %v262, 7
          %v264 = vsub.s32 1, %v263
          %v265 = vrot.slane %v228, %v264
          %v266 = vmul.f32 %v260, %v265
          %v267 = vadd.f32 %v257, %v266
          %268 = vset.pattern.permute.xlu0 2
          %269 = vperm.xlu0 %268, %v227
          %v270 = vpop.permute.xlu0 %269
          %v272 = vlaneseq
          %v273 = vshrl.u32 %v272, 7
          %v274 = vsub.s32 2, %v273
          %v275 = vrot.slane %v228, %v274
          %v276 = vmul.f32 %v270, %v275
          %v277 = vadd.f32 %v267, %v276
          %278 = vset.pattern.permute.xlu0 3
          %279 = vperm.xlu0 %278, %v227
          %v280 = vpop.permute.xlu0 %279
          %v282 = vlaneseq
          %v283 = vshrl.u32 %v282, 7
          %v284 = vsub.s32 3, %v283
          %v285 = vrot.slane %v228, %v284
          %v286 = vmul.f32 %v280, %v285
          %v287 = vadd.f32 %v277, %v286
          %v288 = vlaneseq
          %v289 = vshrl.u32 %v288, 7
          %v290 = vsub.s32 0, %v289
          %v291 = vrot.slane %v229, %v290
          %v292 = vadd.f32 %v287, %v291
          %v293 = vmax.f32 %v292, 0.0
          %v294 = vpack.c.bf16 %v293, %v293
          %v295 = vpack.c.bf16 %v231, %v230
          %v296 = vpack.c.bf16 %v233, %v232
          %v297 = vpack.c.bf16 %v235, %v234
          %v298 = vpack.c.bf16 %v237, %v236
          %v299 = vpack.c.bf16 %v239, %v238
          %v300 = vpack.c.bf16 %v241, %v240
          %v301 = vpack.c.bf16 %v243, %v242
          %v302 = vpack.c.bf16 %v245, %v244
          %v303 = vlaneseq
          %v304 = vshrl.u32 %v303, 7
          %v305 = vsub.s32 0, %v304
          %v306 = vrot.slane %v246, %v305
          %307 = vmatprep.subr.bf16.mxu0 0
          %308 = vmatpush1.bf16.msra.mxu0 %v295
          %309 = vmatprep.subr.bf16.mxu0 0
          %310 = vmatpush1.bf16.msra.mxu0 %v296
          %311 = vmatprep.subr.bf16.mxu0 0
          %312 = vmatpush1.bf16.msra.mxu0 %v297
          %313 = vmatprep.subr.bf16.mxu0 0
          %314 = vmatpush1.bf16.msra.mxu0 %v298
          %315 = vmatprep.subr.bf16.mxu0 0
          %316 = vmatpush1.bf16.msra.mxu0 %v299
          %317 = vmatprep.subr.bf16.mxu0 0
          %318 = vmatpush1.bf16.msra.mxu0 %v300
          %319 = vmatprep.subr.bf16.mxu0 0
          %320 = vmatpush1.bf16.msra.mxu0 %v301
          %321 = vmatprep.subr.bf16.mxu0 0
          %322 = vmatpush1.bf16.msra.mxu0 %v302
          %323 = vmatprep.subr.bf16.mxu0 0
          %324 = vmatpush1.bf16.msra.mxu0 0
          %325 = vmatprep.subr.bf16.mxu0 0
          %326 = vmatpush1.bf16.msra.mxu0 0
          %327 = vmatprep.subr.bf16.mxu0 0
          %328 = vmatpush1.bf16.msra.mxu0 0
          %329 = vmatprep.subr.bf16.mxu0 0
          %330 = vmatpush1.bf16.msra.mxu0 0
          %331 = vmatprep.subr.bf16.mxu0 0
          %332 = vmatpush1.bf16.msra.mxu0 0
          %333 = vmatprep.subr.bf16.mxu0 0
          %334 = vmatpush1.bf16.msra.mxu0 0
          %335 = vmatprep.subr.bf16.mxu0 0
          %336 = vmatpush1.bf16.msra.mxu0 0
          %337 = vmatprep.subr.bf16.mxu0 0
          %338 = vmatpush1.bf16.msra.mxu0 0
          %339 = vmatprep.mubr.bf16.mxu0 0
          %340 = vmatmul.mubr.bf16.gmra.mrb[0].mxu0 %v294
          %v341 = vpop.f32.mrb[0].mxu0
          %v342 = vadd.f32 %v306, %v341
          %v343 = vpop.f32.mrb[0].mxu0
          %v344 = vpop.f32.mrb[0].mxu0
          %v345 = vpop.f32.mrb[0].mxu0
          %346 = vdwg.mxu0
          %347 = vst [vmem:[#allocation8] sm:$0x3] %v342
        $region44: #{tpu_custom_call.1} parent=27 // pred_fallthru
          _
        // Predicated region
        $region45: #{tpu_custom_call.1} parent=27 // pred_check
          %p348 = pneg %p97
        $region46: #{tpu_custom_call.1} parent=27 // pred_check_branch
          %350 = sbr.rel (%p348) target = $region48
        $region47: #{tpu_custom_call.1} parent=27 // pred_region
          %s352 = ssub.s32 32, 32
          %353 = vsyncadd [#allocation5], %s352
          %s354 = smul.addr %s22, 32
          %s355 = scalar_lea.hbm %s2, %s354
          %s357 = sshll.u32 [#allocation8], 4
          %s358 = int_to_ptr.vmem [resolvable:$true] %s357
          %360 = dma.vmem_to_hbm [thread:$0]  %s358, 32, %s355, [#allocation5]
        $region48: #{tpu_custom_call.1} parent=27 // pred_fallthru
          _
        // Predicated region
        $region49: #{tpu_custom_call.1} parent=27 // pred_check
          %p361 = pneg %p97
        $region50: #{tpu_custom_call.1} parent=27 // pred_check_branch
          %363 = sbr.rel (%p361) target = $region52
        $region51: #{tpu_custom_call.1} parent=27 // pred_region
          %364 = dma.done [#allocation5], 32
        $region52: #{tpu_custom_call.1} parent=27 // pred_fallthru
          _
      $region28: #{tpu_custom_call.1} parent=5 // pred_fallthru
        _
      %p365 = scmp.le.s32.totalorder 2, %s13
      // Predicated region
      $region53: #{tpu_custom_call.1} parent=5 // pred_check
        %p366 = pneg %p365
      $region54: #{tpu_custom_call.1} parent=5 // pred_check_branch
        %368 = sbr.rel (%p366) target = $region56
      $region55: #{tpu_custom_call.1} parent=5 // pred_region
        %s369 = ssub.s32 %s13, 2
      $region56: #{tpu_custom_call.1} parent=5 // pred_fallthru
        _
    $region6: #{tpu_custom_call.1} parent=1 // loop_footer
      %s17 = sadd.s32 1, %s13
    $region7: #{tpu_custom_call.1} parent=1 // loop_footer_branch
      %12 = sbr.rel target = $region3
    $region8: #{tpu_custom_call.1} parent=1 // loop_exit
      _
    %370 = vsyncpa [#allocation4], 1
    %s371 = scalar_lea.sflag [#allocation4], 1
    %372 = vsyncpa %s371, 1
    %373 = vsyncpa [#allocation7], 1
    %374 = vsyncpa [#allocation5], 1
    %s375 = scalar_lea.sflag [#allocation5], 1
    %376 = vsyncpa %s375, 1

</llo_original>
